<compile_context>
chip_gen: v7x
topology: tpu7x:2x2x1
jax: 0.10.0
libtpu: 0.0.40
codegen_flags: <defaults>
</compile_context>

<pallas_src>
import functools

import jax
import jax.numpy as jnp
from jax import lax
from jax.experimental import pallas as pl
from jax.experimental.pallas import tpu as pltpu


def _ceil_to(v, m):
    return ((v + m - 1) // m) * m


def temporal_block_kernel(xe_ref, w1a_ref, w2f_ref, bd_ref,
                          g1_ref, be1_ref, g2_ref, be2_ref, mask_ref,
                          o_ref, *, K, dil, pad, slope, eps, inv_n):
    Cout_p, Wp = o_ref.shape
    mask = mask_ref[...]                                   # (1, Wp): 1.0 on real columns

    def bn_leaky(y, gamma, beta):
        # Training-mode BatchNorm1d (biased var) in ONE masked pass; gamma/beta,
        # mean and rsqrt folded into a single scale/shift FMA, then LeakyReLU.
        ym = y * mask
        s1 = jnp.sum(ym, axis=1, keepdims=True)            # (C, 1)  XLU reduce
        s2 = jnp.sum(ym * ym, axis=1, keepdims=True)       # (C, 1)
        mean = s1 * inv_n
        var = jnp.maximum(s2 * inv_n - mean * mean, 0.0)
        scale = gamma * lax.rsqrt(var + eps)               # rsqrt on EUP, per channel
        shift = beta - mean * scale
        h = y * scale + shift
        return jnp.where(h >= 0, h, slope * h)

    def im2col(a):
        # Taps are static lane slices of the already left-padded buffer; stacking
        # K aligned 8-row blocks gives (K*C, Wp) for one deep MXU contraction.
        return jnp.concatenate([a[:, k * dil: k * dil + Wp] for k in range(K)], axis=0)

    # ---- conv1 + fused 1x1 downsample: one (2*Cout, K*Cin) @ (K*Cin, B*Lp) dot ----
    yaug = jnp.dot(w1a_ref[...], im2col(xe_ref[...]),
                   preferred_element_type=jnp.float32)     # (2*Cout_p, Wp)
    y1 = yaug[:Cout_p, :]
    res = yaug[Cout_p:, :] + bd_ref[...]                   # downsample path keeps its bias

    # ---- BN1 + LeakyReLU; re-zero causal-pad columns so h1 doubles as the
    #      left-padded input of conv2 (no fresh zero/concat copies per tap) ----
    h1 = bn_leaky(y1, g1_ref[...], be1_ref[...]) * mask    # (Cout_p, Wp)

    h1e = h1 if pad == 0 else jnp.concatenate(
        [jnp.zeros((Cout_p, pad), h1.dtype), h1], axis=1)  # (Cout_p, pad + Wp)

    # ---- conv2: one (Cout, K*Cout) @ (K*Cout, B*Lp) dot ----
    y2 = jnp.dot(w2f_ref[...], im2col(h1e),
                 preferred_element_type=jnp.float32)       # (Cout_p, Wp)

    h2 = bn_leaky(y2, g2_ref[...], be2_ref[...])
    o_ref[...] = (h2 + res).astype(o_ref.dtype)


def temporal_block(x, params, *, kernel_size, dilation):
    B, Cin, L = x.shape
    K, dil = kernel_size, dilation
    Cout = params["w1"].shape[0]
    pad = (K - 1) * dil
    Lp = L + pad                        # per-batch segment: causal prefix + data
    W = B * Lp                          # flattened (batch, padded-time) width
    Wp = max(128, _ceil_to(W, 128))     # lane-dense width
    Cin_p, Cout_p = _ceil_to(Cin, 8), _ceil_to(Cout, 8)    # sublane-aligned channels

    f32 = jnp.float32
    x = x.astype(f32)

    # Activations: (Cin_p, pad + Wp).  Each batch segment is [pad zeros | x_b];
    # a global `pad` zero prefix makes tap k the static slice [k*dil : k*dil+Wp].
    x_seg = jnp.pad(jnp.transpose(x, (1, 0, 2)),
                    ((0, Cin_p - Cin), (0, 0), (pad, 0)))              # (Cin_p, B, Lp)
    x_ext = jnp.pad(x_seg.reshape(Cin_p, W), ((0, 0), (pad, Wp - W)))  # (Cin_p, pad+Wp)

    def flat_taps(w, cin_pad):          # (Cout, Cin, K) -> (Cout_p, K*cin_pad)
        w = jnp.pad(w.astype(f32),
                    ((0, Cout_p - w.shape[0]), (0, cin_pad - w.shape[1]), (0, 0)))
        return jnp.transpose(w, (0, 2, 1)).reshape(Cout_p, K * cin_pad)

    w1f = flat_taps(params["w1"], Cin_p)                               # (Cout_p, K*Cin_p)
    w2f = flat_taps(params["w2"], Cout_p)                              # (Cout_p, K*Cout_p)

    # Residual path.  PyTorch uses an identity when Cin == Cout; feed the same
    # fused matmul an identity 1x1 weight / zero bias in that case.
    if params.get("wd") is not None:
        wd_raw = params["wd"][:, :, 0].astype(f32)                     # (Cout, Cin)
        bd_raw = params["bd"].astype(f32)
    else:
        wd_raw = jnp.eye(Cout, Cin, dtype=f32)
        bd_raw = jnp.zeros((Cout,), f32)
    wd = jnp.pad(wd_raw, ((0, Cout_p - Cout), (0, Cin_p - Cin)))       # (Cout_p, Cin_p)
    # Fuse the 1x1 downsample into conv1's matmul: it is the shift-0 (k = K-1)
    # tap, so append it as extra output rows of the same im2col dot.
    w1aug = jnp.concatenate(
        [w1f, jnp.concatenate([jnp.zeros((Cout_p, (K - 1) * Cin_p), f32), wd], axis=1)],
        axis=0)                                                        # (2*Cout_p, K*Cin_p)

    def col(v):                         # (Cout,) -> (Cout_p, 1)
        return jnp.pad(v.astype(f32), (0, Cout_p - Cout))[:, None]

    bd, g1, be1, g2, be2 = map(col, (bd_raw, params["g1"], params["be1"],
                                     params["g2"], params["be2"]))
    # NOTE: conv biases b1/b2 are intentionally NOT passed to the kernel — a
    # per-channel constant before training-mode BatchNorm is a mathematical no-op.

    # Valid-column mask: inside the data range and past each segment's causal pad.
    q = jnp.arange(Wp)
    mask = (((q % Lp) >= pad) & (q < W)).astype(f32)[None, :]          # (1, Wp)

    kernel = functools.partial(temporal_block_kernel, K=K, dil=dil, pad=pad,
                               slope=0.01, eps=1e-5, inv_n=1.0 / (B * L))

    # TODO(synk): for very long L, add an L-tiled grid with a two-phase BatchNorm
    # (stats pass, then normalize+conv2 pass) to bound VMEM and enable pipelining.
    vmem = pl.BlockSpec(memory_space=pltpu.MemorySpace.VMEM)
    out_flat = pl.pallas_call(
        kernel,
        out_shape=jax.ShapeDtypeStruct((Cout_p, Wp), f32),
        in_specs=[vmem] * 9,
        out_specs=vmem,
        compiler_params=pltpu.CompilerParams(vmem_limit_bytes=32 * 1024 * 1024),
    )(x_ext, w1aug, w2f, bd, g1, be1, g2, be2, mask)

    # (Cout_p, Wp) -> (B, Cout, L): drop channel/lane padding and causal prefixes.
    out = out_flat[:Cout, :W].reshape(Cout, B, Lp)[:, :, pad:]
    return jnp.transpose(out, (1, 0, 2))


# ----------------------------- pure-JAX reference -----------------------------
def _ref_causal_conv(x, w, b, dilation):
    K = w.shape[-1]
    pad = (K - 1) * dilation
    y = lax.conv_general_dilated(
        x, w, window_strides=(1,), padding=[(pad, 0)],
        rhs_dilation=(dilation,), dimension_numbers=("NCH", "OIH", "NCH"))
    return y + b[None, :, None]


def _ref_bn(h, g, be, eps=1e-5):
    mean = jnp.mean(h, axis=(0, 2), keepdims=True)
    var = jnp.mean((h - mean) ** 2, axis=(0, 2), keepdims=True)
    return (h - mean) * lax.rsqrt(var + eps) * g[None, :, None] + be[None, :, None]


def _ref_forward(x, p, kernel_size, dilation):
    lr = lambda h: jnp.where(h >= 0, h, 0.01 * h)
    h = lr(_ref_bn(_ref_causal_conv(x, p["w1"], p["b1"], dilation), p["g1"], p["be1"]))
    h = lr(_ref_bn(_ref_causal_conv(h, p["w2"], p["b2"], dilation), p["g2"], p["be2"]))
    if p.get("wd") is not None:
        res = lax.conv_general_dilated(
            x, p["wd"], window_strides=(1,), padding=[(0, 0)],
            dimension_numbers=("NCH", "OIH", "NCH")) + p["bd"][None, :, None]
    else:
        res = x
    return h + res


if __name__ == "__main__":
    B, Cin, Cout, L = 2, 4, 8, 16
    K, DIL = 3, 2

    key = jax.random.PRNGKey(0)
    ks = jax.random.split(key, 7)
    params = {
        # conv weights: normal(0, 0.01), as in init_weights()
        "w1": 0.01 * jax.random.normal(ks[0], (Cout, Cin, K), jnp.float32),
        "w2": 0.01 * jax.random.normal(ks[1], (Cout, Cout, K), jnp.float32),
        "wd": 0.01 * jax.random.normal(ks[2], (Cout, Cin, 1), jnp.float32),
        # deterministic synthetic biases (PyTorch would use uniform fan-in init);
        # b1/b2 are consumed only by the reference (BN cancels them exactly)
        "b1": 0.1 * jax.random.normal(ks[3], (Cout,), jnp.float32),
        "b2": 0.1 * jax.random.normal(ks[4], (Cout,), jnp.float32),
        "bd": 0.1 * jax.random.normal(ks[5], (Cout,), jnp.float32),
        # BatchNorm affine params at their PyTorch defaults
        "g1": jnp.ones((Cout,), jnp.float32),
        "be1": jnp.zeros((Cout,), jnp.float32),
        "g2": jnp.ones((Cout,), jnp.float32),
        "be2": jnp.zeros((Cout,), jnp.float32),
    }

    x = jax.random.normal(ks[6], (B, Cin, L), jnp.float32)

    out = temporal_block(x, params, kernel_size=K, dilation=DIL)
    out = jax.block_until_ready(out)

    ref = _ref_forward(x, params, K, DIL)
    assert out.shape == (B, Cout, L)
    assert jnp.allclose(out, ref, rtol=1e-4, atol=1e-4), "mismatch vs JAX reference"

    print("KERNEL_OK")
</pallas_src>

<mosaic_0001>
module attributes {stable_mosaic.version = 11 : i64} {
  func.func @temporal_block_kernel(%arg0: memref<8x132xf32, #tpu.memory_space<vmem>>, %arg1: memref<16x24xf32, #tpu.memory_space<vmem>>, %arg2: memref<8x24xf32, #tpu.memory_space<vmem>>, %arg3: memref<8x1xf32, #tpu.memory_space<vmem>>, %arg4: memref<8x1xf32, #tpu.memory_space<vmem>>, %arg5: memref<8x1xf32, #tpu.memory_space<vmem>>, %arg6: memref<8x1xf32, #tpu.memory_space<vmem>>, %arg7: memref<8x1xf32, #tpu.memory_space<vmem>>, %arg8: memref<1x128xf32, #tpu.memory_space<vmem>>, %arg9: memref<8x128xf32, #tpu.memory_space<vmem>>) attributes {dimension_semantics = [], scalar_prefetch = 0 : i64, scratch_operands = 0 : i64, tpu.core_type = #tpu.core_type<tc>} {
    %c0 = arith.constant 0 : index
    %c0_0 = arith.constant 0 : index
    %0 = vector.load %arg8[%c0, %c0_0] : memref<1x128xf32, #tpu.memory_space<vmem>>, vector<1x128xf32>
    %c0_1 = arith.constant 0 : index
    %c0_2 = arith.constant 0 : index
    %1 = vector.load %arg1[%c0_1, %c0_2] : memref<16x24xf32, #tpu.memory_space<vmem>>, vector<16x24xf32>
    %c0_3 = arith.constant 0 : index
    %c0_4 = arith.constant 0 : index
    %2 = vector.load %arg0[%c0_3, %c0_4] : memref<8x132xf32, #tpu.memory_space<vmem>>, vector<8x132xf32>
    %3 = vector.extract_strided_slice %2 {offsets = [0, 0], sizes = [8, 128], strides = [1, 1]} : vector<8x132xf32> to vector<8x128xf32>
    %4 = vector.extract_strided_slice %2 {offsets = [0, 2], sizes = [8, 128], strides = [1, 1]} : vector<8x132xf32> to vector<8x128xf32>
    %5 = vector.extract_strided_slice %2 {offsets = [0, 4], sizes = [8, 128], strides = [1, 1]} : vector<8x132xf32> to vector<8x128xf32>
    %6 = tpu.concatenate %3, %4, %5 in 0 : vector<8x128xf32>, vector<8x128xf32>, vector<8x128xf32> -> vector<24x128xf32>
    %cst = arith.constant dense<0.000000e+00> : vector<16x128xf32>
    %7 = tpu.matmul %1, %6, %cst {dimension_numbers = #tpu.dot_dimension_numbers<[1], [0], [0], [1], [0, 0, 1, 1], [], []>} : vector<16x24xf32>, vector<24x128xf32>, vector<16x128xf32> -> vector<16x128xf32>
    %8 = vector.extract_strided_slice %7 {offsets = [0, 0], sizes = [8, 128], strides = [1, 1]} : vector<16x128xf32> to vector<8x128xf32>
    %9 = vector.extract_strided_slice %7 {offsets = [8, 0], sizes = [8, 128], strides = [1, 1]} : vector<16x128xf32> to vector<8x128xf32>
    %c0_5 = arith.constant 0 : index
    %c0_6 = arith.constant 0 : index
    %10 = vector.load %arg3[%c0_5, %c0_6] : memref<8x1xf32, #tpu.memory_space<vmem>>, vector<8x1xf32>
    %11 = vector.broadcast %10 : vector<8x1xf32> to vector<8x128xf32>
    %12 = arith.addf %9, %11 : vector<8x128xf32>
    %c0_7 = arith.constant 0 : index
    %c0_8 = arith.constant 0 : index
    %13 = vector.load %arg4[%c0_7, %c0_8] : memref<8x1xf32, #tpu.memory_space<vmem>>, vector<8x1xf32>
    %c0_9 = arith.constant 0 : index
    %c0_10 = arith.constant 0 : index
    %14 = vector.load %arg5[%c0_9, %c0_10] : memref<8x1xf32, #tpu.memory_space<vmem>>, vector<8x1xf32>
    %15 = vector.broadcast %0 : vector<1x128xf32> to vector<8x128xf32>
    %16 = arith.mulf %8, %15 : vector<8x128xf32>
    %cst_11 = arith.constant dense<0.000000e+00> : vector<8xf32>
    %17 = vector.multi_reduction <add>, %16, %cst_11 [1] : vector<8x128xf32> to vector<8xf32>
    %18 = vector.shape_cast %17 : vector<8xf32> to vector<8x1xf32>
    %19 = arith.mulf %16, %16 : vector<8x128xf32>
    %cst_12 = arith.constant dense<0.000000e+00> : vector<8xf32>
    %20 = vector.multi_reduction <add>, %19, %cst_12 [1] : vector<8x128xf32> to vector<8xf32>
    %21 = vector.shape_cast %20 : vector<8xf32> to vector<8x1xf32>
    %cst_13 = arith.constant 3.125000e-02 : f32
    %22 = vector.broadcast %cst_13 : f32 to vector<8x1xf32>
    %23 = arith.mulf %18, %22 : vector<8x1xf32>
    %cst_14 = arith.constant 3.125000e-02 : f32
    %24 = vector.broadcast %cst_14 : f32 to vector<8x1xf32>
    %25 = arith.mulf %21, %24 : vector<8x1xf32>
    %26 = arith.mulf %23, %23 : vector<8x1xf32>
    %27 = arith.subf %25, %26 : vector<8x1xf32>
    %cst_15 = arith.constant 0.000000e+00 : f32
    %28 = vector.broadcast %cst_15 : f32 to vector<8x1xf32>
    %29 = arith.maximumf %27, %28 : vector<8x1xf32>
    %cst_16 = arith.constant 9.99999974E-6 : f32
    %30 = vector.broadcast %cst_16 : f32 to vector<8x1xf32>
    %31 = arith.addf %29, %30 : vector<8x1xf32>
    %32 = math.rsqrt %31 : vector<8x1xf32>
    %33 = arith.mulf %13, %32 : vector<8x1xf32>
    %34 = arith.mulf %23, %33 : vector<8x1xf32>
    %35 = arith.subf %14, %34 : vector<8x1xf32>
    %36 = vector.broadcast %33 : vector<8x1xf32> to vector<8x128xf32>
    %37 = arith.mulf %8, %36 : vector<8x128xf32>
    %38 = vector.broadcast %35 : vector<8x1xf32> to vector<8x128xf32>
    %39 = arith.addf %37, %38 : vector<8x128xf32>
    %cst_17 = arith.constant 0.000000e+00 : f32
    %40 = vector.broadcast %cst_17 : f32 to vector<8x128xf32>
    %41 = arith.cmpf oge, %39, %40 : vector<8x128xf32>
    %cst_18 = arith.constant 0.00999999977 : f32
    %42 = vector.broadcast %cst_18 : f32 to vector<8x128xf32>
    %43 = arith.mulf %42, %39 : vector<8x128xf32>
    %44 = arith.select %41, %39, %43 : vector<8x128xi1>, vector<8x128xf32>
    %45 = vector.broadcast %0 : vector<1x128xf32> to vector<8x128xf32>
    %46 = arith.mulf %44, %45 : vector<8x128xf32>
    %cst_19 = arith.constant 0.000000e+00 : f32
    %47 = vector.broadcast %cst_19 : f32 to vector<8x4xf32>
    %48 = tpu.concatenate %47, %46 in 1 : vector<8x4xf32>, vector<8x128xf32> -> vector<8x132xf32>
    %c0_20 = arith.constant 0 : index
    %c0_21 = arith.constant 0 : index
    %49 = vector.load %arg2[%c0_20, %c0_21] : memref<8x24xf32, #tpu.memory_space<vmem>>, vector<8x24xf32>
    %50 = vector.extract_strided_slice %48 {offsets = [0, 0], sizes = [8, 128], strides = [1, 1]} : vector<8x132xf32> to vector<8x128xf32>
    %51 = vector.extract_strided_slice %48 {offsets = [0, 2], sizes = [8, 128], strides = [1, 1]} : vector<8x132xf32> to vector<8x128xf32>
    %52 = vector.extract_strided_slice %48 {offsets = [0, 4], sizes = [8, 128], strides = [1, 1]} : vector<8x132xf32> to vector<8x128xf32>
    %53 = tpu.concatenate %50, %51, %52 in 0 : vector<8x128xf32>, vector<8x128xf32>, vector<8x128xf32> -> vector<24x128xf32>
    %cst_22 = arith.constant dense<0.000000e+00> : vector<8x128xf32>
    %54 = tpu.matmul %49, %53, %cst_22 {dimension_numbers = #tpu.dot_dimension_numbers<[1], [0], [0], [1], [0, 0, 1, 1], [], []>} : vector<8x24xf32>, vector<24x128xf32>, vector<8x128xf32> -> vector<8x128xf32>
    %c0_23 = arith.constant 0 : index
    %c0_24 = arith.constant 0 : index
    %55 = vector.load %arg6[%c0_23, %c0_24] : memref<8x1xf32, #tpu.memory_space<vmem>>, vector<8x1xf32>
    %c0_25 = arith.constant 0 : index
    %c0_26 = arith.constant 0 : index
    %56 = vector.load %arg7[%c0_25, %c0_26] : memref<8x1xf32, #tpu.memory_space<vmem>>, vector<8x1xf32>
    %57 = vector.broadcast %0 : vector<1x128xf32> to vector<8x128xf32>
    %58 = arith.mulf %54, %57 : vector<8x128xf32>
    %cst_27 = arith.constant dense<0.000000e+00> : vector<8xf32>
    %59 = vector.multi_reduction <add>, %58, %cst_27 [1] : vector<8x128xf32> to vector<8xf32>
    %60 = vector.shape_cast %59 : vector<8xf32> to vector<8x1xf32>
    %61 = arith.mulf %58, %58 : vector<8x128xf32>
    %cst_28 = arith.constant dense<0.000000e+00> : vector<8xf32>
    %62 = vector.multi_reduction <add>, %61, %cst_28 [1] : vector<8x128xf32> to vector<8xf32>
    %63 = vector.shape_cast %62 : vector<8xf32> to vector<8x1xf32>
    %cst_29 = arith.constant 3.125000e-02 : f32
    %64 = vector.broadcast %cst_29 : f32 to vector<8x1xf32>
    %65 = arith.mulf %60, %64 : vector<8x1xf32>
    %cst_30 = arith.constant 3.125000e-02 : f32
    %66 = vector.broadcast %cst_30 : f32 to vector<8x1xf32>
    %67 = arith.mulf %63, %66 : vector<8x1xf32>
    %68 = arith.mulf %65, %65 : vector<8x1xf32>
    %69 = arith.subf %67, %68 : vector<8x1xf32>
    %cst_31 = arith.constant 0.000000e+00 : f32
    %70 = vector.broadcast %cst_31 : f32 to vector<8x1xf32>
    %71 = arith.maximumf %69, %70 : vector<8x1xf32>
    %cst_32 = arith.constant 9.99999974E-6 : f32
    %72 = vector.broadcast %cst_32 : f32 to vector<8x1xf32>
    %73 = arith.addf %71, %72 : vector<8x1xf32>
    %74 = math.rsqrt %73 : vector<8x1xf32>
    %75 = arith.mulf %55, %74 : vector<8x1xf32>
    %76 = arith.mulf %65, %75 : vector<8x1xf32>
    %77 = arith.subf %56, %76 : vector<8x1xf32>
    %78 = vector.broadcast %75 : vector<8x1xf32> to vector<8x128xf32>
    %79 = arith.mulf %54, %78 : vector<8x128xf32>
    %80 = vector.broadcast %77 : vector<8x1xf32> to vector<8x128xf32>
    %81 = arith.addf %79, %80 : vector<8x128xf32>
    %cst_33 = arith.constant 0.000000e+00 : f32
    %82 = vector.broadcast %cst_33 : f32 to vector<8x128xf32>
    %83 = arith.cmpf oge, %81, %82 : vector<8x128xf32>
    %cst_34 = arith.constant 0.00999999977 : f32
    %84 = vector.broadcast %cst_34 : f32 to vector<8x128xf32>
    %85 = arith.mulf %84, %81 : vector<8x128xf32>
    %86 = arith.select %83, %81, %85 : vector<8x128xi1>, vector<8x128xf32>
    %87 = arith.addf %86, %12 : vector<8x128xf32>
    %c0_35 = arith.constant 0 : index
    %c0_36 = arith.constant 0 : index
    %88 = vector.load %arg9[%c0_35, %c0_36] : memref<8x128xf32, #tpu.memory_space<vmem>>, vector<8x128xf32>
    tpu.vector_store %arg9[%c0_35, %c0_36], %87 {strides = array<i32>} : memref<8x128xf32, #tpu.memory_space<vmem>>, vector<8x128xf32>,
    return
  }
}

</mosaic_0001>

<llo_original>
// kernel: tpu_custom_call.1
$region0: #{tpu_custom_call.1}
  #allocation0 [shape = 'u32[]', space=smem, size = 0x4, offset = 0x4, fixed_abs, tag = 'smem constant byte address 0x4 - core index']
  #allocation1 [shape = 'u32[144,128]{1,0:T(1,128)}', space=vmem, size = 0x12000, scoped, tag = 'internal scratch']
  %s0 = inlined_call_operand.vmem [shape: f32[8,132], index: 0, kind: input, shape index: {}]
  %s1 = inlined_call_operand.vmem [shape: f32[16,24], index: 1, kind: input, shape index: {}]
  %s2 = inlined_call_operand.vmem [shape: f32[8,24], index: 2, kind: input, shape index: {}]
  %s3 = inlined_call_operand.vmem [shape: f32[8,1], index: 3, kind: input, shape index: {}]
  %s4 = inlined_call_operand.vmem [shape: f32[8,1], index: 4, kind: input, shape index: {}]
  %s5 = inlined_call_operand.vmem [shape: f32[8,1], index: 5, kind: input, shape index: {}]
  %s6 = inlined_call_operand.vmem [shape: f32[8,1], index: 6, kind: input, shape index: {}]
  %s7 = inlined_call_operand.vmem [shape: f32[8,1], index: 7, kind: input, shape index: {}]
  %s8 = inlined_call_operand.vmem [shape: f32[1,128], index: 8, kind: input, shape index: {}]
  %s9 = inlined_call_operand.hbm [shape: f32[8,128], index: 9, kind: output, shape index: {}]
  %s10 = sld [smem:[#allocation0]]
  $region46: #{tpu_custom_call.1} parent=0
    _
  %s12 = ssub.s32 1, %s10
  %s13 = scalar_select 0, %s12, %s10
  $region1: #{tpu_custom_call.1} parent=0
    #allocation2 [shape = 'u8[4096]{0}', space=vmem, size = 0x1000, scoped, tag = 'output window, operand 0, single buffered']
    #allocation3 [shape = 's32[1]{0}', space=sflag, size = 0x4, scoped, tag = 'scoped memory for tpu_custom_call.1']
    %14 = vsyncpa [#allocation3], 0
    // Predicated region
    $region2: #{tpu_custom_call.1} parent=1 // pred_check
      _
    $region3: #{tpu_custom_call.1} parent=1 // pred_check_branch
      %16 = sbr.rel (0) target = $region5
    $region4: #{tpu_custom_call.1} parent=1 // pred_region
      _
    $region5: #{tpu_custom_call.1} parent=1 // pred_fallthru
      _
    // Predicated region
    $region6: #{tpu_custom_call.1} parent=1 // pred_check
      _
    $region7: #{tpu_custom_call.1} parent=1 // pred_check_branch
      %18 = sbr.rel (0) target = $region9
    $region8: #{tpu_custom_call.1} parent=1 // pred_region
      _
    $region9: #{tpu_custom_call.1} parent=1 // pred_fallthru
      _
    // Predicated region
    $region10: #{tpu_custom_call.1} parent=1 // pred_check
      _
    $region11: #{tpu_custom_call.1} parent=1 // pred_check_branch
      %20 = sbr.rel (0) target = $region13
    $region12: #{tpu_custom_call.1} parent=1 // pred_region
      _
    $region13: #{tpu_custom_call.1} parent=1 // pred_fallthru
      _
    // Predicated region
    $region14: #{tpu_custom_call.1} parent=1 // pred_check
      _
    $region15: #{tpu_custom_call.1} parent=1 // pred_check_branch
      %22 = sbr.rel (0) target = $region17
    $region16: #{tpu_custom_call.1} parent=1 // pred_region
      _
    $region17: #{tpu_custom_call.1} parent=1 // pred_fallthru
      _
    // Predicated region
    $region18: #{tpu_custom_call.1} parent=1 // pred_check
      _
    $region19: #{tpu_custom_call.1} parent=1 // pred_check_branch
      %24 = sbr.rel (0) target = $region21
    $region20: #{tpu_custom_call.1} parent=1 // pred_region
      _
    $region21: #{tpu_custom_call.1} parent=1 // pred_fallthru
      _
    // Predicated region
    $region22: #{tpu_custom_call.1} parent=1 // pred_check
      _
    $region23: #{tpu_custom_call.1} parent=1 // pred_check_branch
      %26 = sbr.rel (0) target = $region25
    $region24: #{tpu_custom_call.1} parent=1 // pred_region
      _
    $region25: #{tpu_custom_call.1} parent=1 // pred_fallthru
      _
    // Predicated region
    $region26: #{tpu_custom_call.1} parent=1 // pred_check
      _
    $region27: #{tpu_custom_call.1} parent=1 // pred_check_branch
      %28 = sbr.rel (0) target = $region29
    $region28: #{tpu_custom_call.1} parent=1 // pred_region
      _
    $region29: #{tpu_custom_call.1} parent=1 // pred_fallthru
      _
    // Predicated region
    $region30: #{tpu_custom_call.1} parent=1 // pred_check
      _
    $region31: #{tpu_custom_call.1} parent=1 // pred_check_branch
      %30 = sbr.rel (0) target = $region33
    $region32: #{tpu_custom_call.1} parent=1 // pred_region
      _
    $region33: #{tpu_custom_call.1} parent=1 // pred_fallthru
      _
    // Predicated region
    $region34: #{tpu_custom_call.1} parent=1 // pred_check
      _
    $region35: #{tpu_custom_call.1} parent=1 // pred_check_branch
      %32 = sbr.rel (0) target = $region37
    $region36: #{tpu_custom_call.1} parent=1 // pred_region
      _
    $region37: #{tpu_custom_call.1} parent=1 // pred_fallthru
      _
    %v33 = vld [vmem:[%s8] sm:$0x1]
    %v34 = vld [vmem:[%s1] sm:$0xff]
    %v35 = vld [vmem:[%s1 + $0x8] sm:$0xff]
    %v36 = vld [vmem:[%s0] sm:$0xff]
    %v37 = vld [vmem:[%s0 + $0x8] sm:$0xff]
    %40 = vrot.lane.b32.xlu0 %v36, 126
    %v41 = vpop.permute.xlu0 %40
    %42 = vrot.lane.b32.xlu0 %v37, 126
    %v43 = vpop.permute.xlu0 %42
    %vm44 = vcmask 1031168
    %v45 = vsel %vm44, %v41, %v43
    %47 = vrot.lane.b32.xlu0 %v36, 124
    %v48 = vpop.permute.xlu0 %47
    %49 = vrot.lane.b32.xlu0 %v37, 124
    %v50 = vpop.permute.xlu0 %49
    %vm51 = vcmask 1014784
    %v52 = vsel %vm51, %v48, %v50
    %vm54 = vcmask 195584
    %v56 = vsel %vm54, %v34, 0
    %v59 = vsel %vm54, %v35, 0
    %61 = vmatprep.subr.mxu0 0.0
    %62 = vmatpush1.msra.mxu0 %v36
    %63 = vmatprep.subr.mxu0 0.0
    %64 = vmatpush1.msra.mxu0 %v45
    %65 = vmatprep.subr.mxu0 0.0
    %66 = vmatpush1.msra.mxu0 %v52
    %67 = vmatprep.subr.mxu0 0.0
    %68 = vmatpush1.msra.mxu0 0.0
    %69 = vmatprep.subr.mxu0 0.0
    %70 = vmatpush1.msra.mxu0 0.0
    %71 = vmatprep.subr.mxu0 0.0
    %72 = vmatpush1.msra.mxu0 0.0
    %73 = vmatprep.subr.mxu0 0.0
    %74 = vmatpush1.msra.mxu0 0.0
    %75 = vmatprep.subr.mxu0 0.0
    %76 = vmatpush1.msra.mxu0 0.0
    %77 = vmatprep.subr.mxu0 0.0
    %78 = vmatpush1.msra.mxu0 0.0
    %79 = vmatprep.subr.mxu0 0.0
    %80 = vmatpush1.msra.mxu0 0.0
    %81 = vmatprep.subr.mxu0 0.0
    %82 = vmatpush1.msra.mxu0 0.0
    %83 = vmatprep.subr.mxu0 0.0
    %84 = vmatpush1.msra.mxu0 0.0
    %85 = vmatprep.subr.mxu0 0.0
    %86 = vmatpush1.msra.mxu0 0.0
    %87 = vmatprep.subr.mxu0 0.0
    %88 = vmatpush1.msra.mxu0 0.0
    %89 = vmatprep.subr.mxu0 0.0
    %90 = vmatpush1.msra.mxu0 0.0
    %91 = vmatprep.subr.mxu0 0.0
    %92 = vmatpush1.msra.mxu0 0.0
    %93 = vmatprep.subr.mxu0 0.0
    %94 = vmatpush1.msra.mxu0 0.0
    %95 = vmatprep.subr.mxu0 0.0
    %96 = vmatpush1.msra.mxu0 0.0
    %97 = vmatprep.subr.mxu0 0.0
    %98 = vmatpush1.msra.mxu0 0.0
    %99 = vmatprep.subr.mxu0 0.0
    %100 = vmatpush1.msra.mxu0 0.0
    %101 = vmatprep.subr.mxu0 0.0
    %102 = vmatpush1.msra.mxu0 0.0
    %103 = vmatprep.subr.mxu0 0.0
    %104 = vmatpush1.msra.mxu0 0.0
    %105 = vmatprep.subr.mxu0 0.0
    %106 = vmatpush1.msra.mxu0 0.0
    %107 = vmatprep.subr.mxu0 0.0
    %108 = vmatpush1.msra.mxu0 0.0
    %109 = vmatprep.subr.mxu0 0.0
    %110 = vmatpush1.msra.mxu0 0.0
    %111 = vmatprep.subr.mxu0 0.0
    %112 = vmatpush1.msra.mxu0 0.0
    %113 = vmatprep.subr.mxu0 0.0
    %114 = vmatpush1.msra.mxu0 0.0
    %115 = vmatprep.subr.mxu0 0.0
    %116 = vmatpush1.msra.mxu0 0.0
    %117 = vmatprep.subr.mxu0 0.0
    %118 = vmatpush1.msra.mxu0 0.0
    %119 = vmatprep.subr.mxu0 0.0
    %120 = vmatpush1.msra.mxu0 0.0
    %121 = vmatprep.subr.mxu0 0.0
    %122 = vmatpush1.msra.mxu0 0.0
    %123 = vmatprep.subr.mxu0 0.0
    %124 = vmatpush1.msra.mxu0 0.0
    %125 = vmatprep.mubr.f32.mxu0 0.0
    %126 = vmatmul.mubr.f32.gmra.mrb[0].mxu0 %v56
    %v127 = vpop.f32.mrb[0].mxu0
    %v128 = vadd.f32 0.0, %v127
    %v129 = vpop.f32.mrb[0].mxu0
    %130 = vmatprep.mubr.f32.mxu0 0.0
    %131 = vmatmul.mubr.f32.gmra.mrb[0].mxu0 %v59
    %v132 = vpop.f32.mrb[0].mxu0
    %v133 = vadd.f32 0.0, %v132
    %v134 = vpop.f32.mrb[0].mxu0
    %135 = vdwg.mxu0
    %v136 = vld [vmem:[%s3] sm:$0xff]
    %138 = vset.pattern.permute.xlu0 0
    %139 = vperm.xlu0 %138, %v136
    %v140 = vpop.permute.xlu0 %139
    %v142 = vadd.f32 %v133, %v140
    %v143 = vld [vmem:[%s4] sm:$0xff]
    %v144 = vld [vmem:[%s5] sm:$0xff]
    %v146 = vlaneseq
    %v147 = vshrl.u32 %v146, 7
    %v148 = vsub.s32 0, %v147
    %v149 = vrot.slane %v33, %v148
    %v151 = vmul.f32 %v128, %v149
    %152 = vadd.xlane.f32.xlu0 %v151
    %v153 = vpop.xlane.xlu0 %152
    %v154 = vmul.f32 %v151, %v151
    %155 = vadd.xlane.f32.xlu0 %v154
    %v156 = vpop.xlane.xlu0 %155
    %v157 = vmul.f32 %v153, 0.03125
    %v158 = vmul.f32 %v156, 0.03125
    %v159 = vmul.f32 %v157, %v157
    %v160 = vsub.f32 %v158, %v159
    %v161 = vmax.f32 %v160, 0.0
    %v162 = vadd.f32 %v161, 1e-05
    %v163 = vrsqrt.pop %v162
    %v164 = vmul.f32 %v143, %v163
    %v165 = vmul.f32 %v157, %v164
    %v166 = vsub.f32 %v144, %v165
    %168 = vset.pattern.permute.xlu0 0
    %169 = vperm.xlu0 %168, %v164
    %v170 = vpop.permute.xlu0 %169
    %v172 = vmul.f32 %v128, %v170
    %174 = vset.pattern.permute.xlu0 0
    %175 = vperm.xlu0 %174, %v166
    %v176 = vpop.permute.xlu0 %175
    %v178 = vadd.f32 %v172, %v176
    %vm179 = vcmp.ge.f32.partialorder %v178, 0.0
    %v180 = vmul.f32 %v178, 0.01
    %v181 = vsel %vm179, %v178, %v180
    %v182 = vmul.f32 %v181, %v149
    %184 = vrot.lane.b32.xlu0 %v182, 4
    %v185 = vpop.permute.xlu0 %184
    %vm187 = vcmask 31744
    %v188 = vsel %vm187, 0.0, %v185
    %v189 = vld [vmem:[%s2] sm:$0xff]
    %191 = vrot.lane.b32.xlu0 %v188, 126
    %v192 = vpop.permute.xlu0 %191
    %193 = vrot.lane.b32.xlu0 %v185, 126
    %v194 = vpop.permute.xlu0 %193
    %v195 = vsel %vm44, %v192, %v194
    %197 = vrot.lane.b32.xlu0 %v188, 124
    %v198 = vpop.permute.xlu0 %197
    %199 = vrot.lane.b32.xlu0 %v185, 124
    %v200 = vpop.permute.xlu0 %199
    %v201 = vsel %vm51, %v198, %v200
    %v204 = vsel %vm54, %v189, 0
    %206 = vmatprep.subr.mxu0 0.0
    %207 = vmatpush1.msra.mxu0 %v188
    %208 = vmatprep.subr.mxu0 0.0
    %209 = vmatpush1.msra.mxu0 %v195
    %210 = vmatprep.subr.mxu0 0.0
    %211 = vmatpush1.msra.mxu0 %v201
    %212 = vmatprep.subr.mxu0 0.0
    %213 = vmatpush1.msra.mxu0 0.0
    %214 = vmatprep.subr.mxu0 0.0
    %215 = vmatpush1.msra.mxu0 0.0
    %216 = vmatprep.subr.mxu0 0.0
    %217 = vmatpush1.msra.mxu0 0.0
    %218 = vmatprep.subr.mxu0 0.0
    %219 = vmatpush1.msra.mxu0 0.0
    %220 = vmatprep.subr.mxu0 0.0
    %221 = vmatpush1.msra.mxu0 0.0
    %222 = vmatprep.subr.mxu0 0.0
    %223 = vmatpush1.msra.mxu0 0.0
    %224 = vmatprep.subr.mxu0 0.0
    %225 = vmatpush1.msra.mxu0 0.0
    %226 = vmatprep.subr.mxu0 0.0
    %227 = vmatpush1.msra.mxu0 0.0
    %228 = vmatprep.subr.mxu0 0.0
    %229 = vmatpush1.msra.mxu0 0.0
    %230 = vmatprep.subr.mxu0 0.0
    %231 = vmatpush1.msra.mxu0 0.0
    %232 = vmatprep.subr.mxu0 0.0
    %233 = vmatpush1.msra.mxu0 0.0
    %234 = vmatprep.subr.mxu0 0.0
    %235 = vmatpush1.msra.mxu0 0.0
    %236 = vmatprep.subr.mxu0 0.0
    %237 = vmatpush1.msra.mxu0 0.0
    %238 = vmatprep.subr.mxu0 0.0
    %239 = vmatpush1.msra.mxu0 0.0
    %240 = vmatprep.subr.mxu0 0.0
    %241 = vmatpush1.msra.mxu0 0.0
    %242 = vmatprep.subr.mxu0 0.0
    %243 = vmatpush1.msra.mxu0 0.0
    %244 = vmatprep.subr.mxu0 0.0
    %245 = vmatpush1.msra.mxu0 0.0
    %246 = vmatprep.subr.mxu0 0.0
    %247 = vmatpush1.msra.mxu0 0.0
    %248 = vmatprep.subr.mxu0 0.0
    %249 = vmatpush1.msra.mxu0 0.0
    %250 = vmatprep.subr.mxu0 0.0
    %251 = vmatpush1.msra.mxu0 0.0
    %252 = vmatprep.subr.mxu0 0.0
    %253 = vmatpush1.msra.mxu0 0.0
    %254 = vmatprep.subr.mxu0 0.0
    %255 = vmatpush1.msra.mxu0 0.0
    %256 = vmatprep.subr.mxu0 0.0
    %257 = vmatpush1.msra.mxu0 0.0
    %258 = vmatprep.subr.mxu0 0.0
    %259 = vmatpush1.msra.mxu0 0.0
    %260 = vmatprep.subr.mxu0 0.0
    %261 = vmatpush1.msra.mxu0 0.0
    %262 = vmatprep.subr.mxu0 0.0
    %263 = vmatpush1.msra.mxu0 0.0
    %264 = vmatprep.subr.mxu0 0.0
    %265 = vmatpush1.msra.mxu0 0.0
    %266 = vmatprep.subr.mxu0 0.0
    %267 = vmatpush1.msra.mxu0 0.0
    %268 = vmatprep.subr.mxu0 0.0
    %269 = vmatpush1.msra.mxu0 0.0
    %270 = vmatprep.mubr.f32.mxu0 0.0
    %271 = vmatmul.mubr.f32.gmra.mrb[0].mxu0 %v204
    %v272 = vpop.f32.mrb[0].mxu0
    %v273 = vadd.f32 0.0, %v272
    %v274 = vpop.f32.mrb[0].mxu0
    %275 = vdwg.mxu0
    %v276 = vld [vmem:[%s6] sm:$0xff]
    %v277 = vld [vmem:[%s7] sm:$0xff]
    %v278 = vmul.f32 %v273, %v149
    %279 = vadd.xlane.f32.xlu0 %v278
    %v280 = vpop.xlane.xlu0 %279
    %v281 = vmul.f32 %v278, %v278
    %282 = vadd.xlane.f32.xlu0 %v281
    %v283 = vpop.xlane.xlu0 %282
    %v284 = vmul.f32 %v280, 0.03125
    %v285 = vmul.f32 %v283, 0.03125
    %v286 = vmul.f32 %v284, %v284
    %v287 = vsub.f32 %v285, %v286
    %v288 = vmax.f32 %v287, 0.0
    %v289 = vadd.f32 %v288, 1e-05
    %v290 = vrsqrt.pop %v289
    %v291 = vmul.f32 %v276, %v290
    %v292 = vmul.f32 %v284, %v291
    %v293 = vsub.f32 %v277, %v292
    %295 = vset.pattern.permute.xlu0 0
    %296 = vperm.xlu0 %295, %v291
    %v297 = vpop.permute.xlu0 %296
    %v299 = vmul.f32 %v273, %v297
    %301 = vset.pattern.permute.xlu0 0
    %302 = vperm.xlu0 %301, %v293
    %v303 = vpop.permute.xlu0 %302
    %v305 = vadd.f32 %v299, %v303
    %vm306 = vcmp.ge.f32.partialorder %v305, 0.0
    %v307 = vmul.f32 %v305, 0.01
    %v308 = vsel %vm306, %v305, %v307
    %v309 = vadd.f32 %v308, %v142
    %310 = vst [vmem:[#allocation2] sm:$0xff] %v309
    // Predicated region
    $region38: #{tpu_custom_call.1} parent=1 // pred_check
      _
    $region39: #{tpu_custom_call.1} parent=1 // pred_check_branch
      %312 = sbr.rel (0) target = $region41
    $region40: #{tpu_custom_call.1} parent=1 // pred_region
      %s314 = ssub.s32 128, 128
      %315 = vsyncadd [#allocation3], %s314
      %s317 = sshll.u32 [#allocation2], 4
      %s318 = int_to_ptr.vmem [resolvable:$true] %s317
      %320 = dma.vmem_to_hbm [thread:$0]  %s318, 128, %s9, [#allocation3]
    $region41: #{tpu_custom_call.1} parent=1 // pred_fallthru
      _
    // Predicated region
    $region42: #{tpu_custom_call.1} parent=1 // pred_check
      _
    $region43: #{tpu_custom_call.1} parent=1 // pred_check_branch
      %322 = sbr.rel (0) target = $region45
    $region44: #{tpu_custom_call.1} parent=1 // pred_region
      %323 = dma.done [#allocation3], 128
    $region45: #{tpu_custom_call.1} parent=1 // pred_fallthru
      _
    %324 = vsyncpa [#allocation3], 1

</llo_original>
